<compile_context>
chip_gen: v6e
topology: v6e:2x2x1
jax: 0.10.0
libtpu: 0.0.40
codegen_flags: <defaults>
</compile_context>

<pallas_src>
import jax
import jax.numpy as jnp
from jax.experimental import pallas as pl
from jax.experimental.pallas import tpu as pltpu


_VMEM_LIMIT_BYTES = 32 * 1024 * 1024     # scoped VMEM request (<= v7x 64 MiB physical)
_BLOCK_BUDGET_BYTES = 24 * 1024 * 1024   # headroom under the scoped limit
_MIN_SPLIT_BYTES = 1 * 1024 * 1024       # only split for 2 TCs if shards keep >=1 MiB


def _add_convtrans_noise_kernel(noise_ref, w_ref, inp_ref, out_ref):
    # noise_ref: (bb, CK_pad, L_out)  im2col'd, zero-padded noise block (VMEM)
    # w_ref:     (C_out, CK_pad)      flattened flipped ConvTranspose1d weight
    # inp_ref:   (bb, C_out, L_out)
    # out_ref:   (bb, C_out, L_out)
    bb = noise_ref.shape[0]
    # Hoisted once per grid step; tiny (bb, C_out, CK_pad) weight replica so the
    # whole block is one batched MXU contraction (no per-sample Python loop).
    w = jnp.broadcast_to(w_ref[...][None], (bb,) + w_ref.shape)
    conv = jnp.einsum(
        "bok,bkl->bol", w, noise_ref[...],
        preferred_element_type=jnp.float32,
    )                                                     # (bb, C_out, L_out) f32
    out_ref[...] = (inp_ref[...] + conv).astype(out_ref.dtype)


def _per_sample_vmem_bytes(c_out, l_out, ck_pad, in_dtype, noise_dtype, w_dtype):
    io = c_out * l_out * jnp.dtype(in_dtype).itemsize       # one inp row == one out row
    nz = ck_pad * l_out * jnp.dtype(noise_dtype).itemsize   # one im2col noise row
    conv_f32 = c_out * l_out * 4                            # in-kernel f32 conv temp
    w_bcast = c_out * ck_pad * jnp.dtype(w_dtype).itemsize  # broadcast weight replica
    # noise / inp / out blocks are double-buffered by the Pallas pipeline.
    return 2 * (nz + 2 * io) + conv_f32 + w_bcast


def _pick_batch_block(batch, per_sample_bytes,
                      budget_bytes=_BLOCK_BUDGET_BYTES,
                      min_split_bytes=_MIN_SPLIT_BYTES):
    """Largest divisor of `batch` whose VMEM footprint fits the budget.

    If the whole batch fits in one block, still prefer >=2 grid steps (v7x has
    two TensorCores) as long as each shard keeps >= min_split_bytes of work.
    """
    divisors = [d for d in range(1, batch + 1) if batch % d == 0]
    fitting = [d for d in divisors if d * per_sample_bytes <= budget_bytes]
    bb = max(fitting) if fitting else 1
    if bb == batch and batch > 1:
        splits = [d for d in divisors
                  if d < batch and d * per_sample_bytes >= min_split_bytes]
        if splits:
            bb = max(splits)
    return bb


def add_conv_noise(inp: jax.Array, weight: jax.Array, noise: jax.Array) -> jax.Array:
    """out = inp + ConvTranspose1d(weight, stride=1, padding=0, bias=False)(noise)."""
    B, C_out, L_out = inp.shape
    C_in, C_out_w, K = weight.shape
    Bn, C_in_n, L = noise.shape
    assert (Bn, C_in_n) == (B, C_in), "noise must be (batch, in_channels, lat_dim)"
    assert C_out_w == C_out, "weight must be (in_channels, out_channels, kernel_size)"
    assert L_out == L + K - 1, "inp spatial dim must equal lat_dim + kernel_size - 1"

    # --- Wrapper-side im2col of the (small) noise tensor -------------------------
    # ConvTranspose1d as a gather:
    #   conv[b,o,t] = sum_{c,k} W[c,o,K-1-k] * noise_pad[b,c,t+k]
    # with noise_pad zero-padded by K-1 on each side of the spatial axis.
    noise_pad = jnp.pad(noise, ((0, 0), (0, 0), (K - 1, K - 1)))
    # noise_col[b, c*K + k, t] = noise_pad[b, c, t + k]
    noise_col = jnp.stack([noise_pad[:, :, k:k + L_out] for k in range(K)], axis=2)
    noise_col = noise_col.reshape(B, C_in * K, L_out)
    # w2[o, c*K + k] = weight[c, o, K-1-k]   (keeps the model dtype: no forced f32)
    w2 = jnp.transpose(weight[:, :, ::-1], (1, 0, 2)).reshape(C_out, C_in * K)

    # Pad the contraction dim (C_in*K) up to a multiple of 8 so MXU/vreg operands
    # stay tile-aligned; padded zeros contribute zero to the contraction.
    CK = C_in * K
    CK_pad = -(-CK // 8) * 8
    if CK_pad != CK:
        noise_col = jnp.pad(noise_col, ((0, 0), (0, CK_pad - CK), (0, 0)))
        w2 = jnp.pad(w2, ((0, 0), (0, CK_pad - CK)))

    # --- VMEM-budgeted batch block ------------------------------------------------
    per_sample = _per_sample_vmem_bytes(
        C_out, L_out, CK_pad, inp.dtype, noise_col.dtype, w2.dtype)
    bb = _pick_batch_block(B, per_sample)
    grid = (B // bb,)

    return pl.pallas_call(
        _add_convtrans_noise_kernel,
        out_shape=jax.ShapeDtypeStruct((B, C_out, L_out), inp.dtype),
        grid_spec=pltpu.PrefetchScalarGridSpec(
            num_scalar_prefetch=0,
            grid=grid,
            in_specs=[
                pl.BlockSpec((bb, CK_pad, L_out), lambda i: (i, 0, 0)),
                pl.BlockSpec((C_out, CK_pad), lambda i: (0, 0)),
                pl.BlockSpec((bb, C_out, L_out), lambda i: (i, 0, 0)),
            ],
            out_specs=pl.BlockSpec((bb, C_out, L_out), lambda i: (i, 0, 0)),
        ),
        compiler_params=pltpu.CompilerParams(
            dimension_semantics=("parallel",),
            vmem_limit_bytes=_VMEM_LIMIT_BYTES,
        ),
    )(noise_col, w2, inp)


if __name__ == "__main__":
    key = jax.random.PRNGKey(0)
    k_w, k_noise, k_inp = jax.random.split(key, 3)

    batch, in_channels, out_channels = 2, 4, 4
    lat_dim, kernel_size = 8, 3
    L_out = lat_dim + kernel_size - 1  # ConvTranspose1d output length (stride 1, pad 0)

    # Deterministic "module parameter" and inputs.
    weight = 0.1 * jax.random.normal(
        k_w, (in_channels, out_channels, kernel_size), dtype=jnp.float32
    )
    # noise_dist = torch.randn -> standard normal, sampled per forward call.
    noise = jax.random.normal(k_noise, (batch, in_channels, lat_dim), dtype=jnp.float32)
    inp = jax.random.normal(k_inp, (batch, out_channels, L_out), dtype=jnp.float32)

    out = add_conv_noise(inp, weight, noise)
    out = jax.block_until_ready(out)

    # Pure-JAX reference: direct ConvTranspose1d definition (output-scatter form),
    # independent of the kernel's im2col / input-gather formulation.
    conv_noise = jnp.zeros((batch, out_channels, L_out), jnp.float32)
    for k in range(kernel_size):
        contrib = jnp.einsum("bcl,co->bol", noise, weight[:, :, k])
        conv_noise = conv_noise.at[:, :, k:k + lat_dim].add(contrib)
    ref = inp + conv_noise

    assert out.shape == inp.shape
    assert jnp.allclose(out, ref, atol=1e-5, rtol=1e-5)

    print("KERNEL_OK")
</pallas_src>

<mosaic_0001>
module attributes {stable_mosaic.version = 11 : i64} {
  func.func @_add_convtrans_noise_kernel(%arg0: i32, %arg1: memref<2x16x10xf32, #tpu.memory_space<vmem>>, %arg2: memref<4x16xf32, #tpu.memory_space<vmem>>, %arg3: memref<2x4x10xf32, #tpu.memory_space<vmem>>, %arg4: memref<2x4x10xf32, #tpu.memory_space<vmem>>) attributes {dimension_semantics = [#tpu.dimension_semantics<parallel>], iteration_bounds = array<i64: 1>, scalar_prefetch = 0 : i64, scratch_operands = 0 : i64, tpu.core_type = #tpu.core_type<tc>, window_params = [{transform_indices = @transform_0, window_bounds = array<i64: 2, 16, 10>}, {pipeline_mode = #tpu.pipeline_mode<synchronous>, transform_indices = @transform_1, window_bounds = array<i64: 4, 16>}, {transform_indices = @transform_2, window_bounds = array<i64: 2, 4, 10>}, {transform_indices = @transform_3, window_bounds = array<i64: 2, 4, 10>}]} {
    %c0 = arith.constant 0 : index
    %c0_0 = arith.constant 0 : index
    %0 = vector.load %arg2[%c0, %c0_0] : memref<4x16xf32, #tpu.memory_space<vmem>>, vector<4x16xf32>
    %1 = vector.shape_cast %0 : vector<4x16xf32> to vector<1x4x16xf32>
    %2 = vector.shape_cast %1 : vector<1x4x16xf32> to vector<1x4x16xf32>
    %3 = vector.broadcast %2 : vector<1x4x16xf32> to vector<2x4x16xf32>
    %c0_1 = arith.constant 0 : index
    %c0_2 = arith.constant 0 : index
    %c0_3 = arith.constant 0 : index
    %4 = vector.load %arg1[%c0_1, %c0_2, %c0_3] : memref<2x16x10xf32, #tpu.memory_space<vmem>>, vector<2x16x10xf32>
    "tpu.trace_start"() <{level = 10 : i32, message = "bok,bkl->bol"}> : () -> ()
    %cst = arith.constant dense<0.000000e+00> : vector<2x4x10xf32>
    %5 = tpu.matmul %3, %4, %cst {dimension_numbers = #tpu.dot_dimension_numbers<[2], [1], [1], [2], [0, 0, 0, 1, 1, 2], [0], [0]>} : vector<2x4x16xf32>, vector<2x16x10xf32>, vector<2x4x10xf32> -> vector<2x4x10xf32>
    "tpu.trace_stop"() : () -> ()
    %c0_4 = arith.constant 0 : index
    %c0_5 = arith.constant 0 : index
    %c0_6 = arith.constant 0 : index
    %6 = vector.load %arg3[%c0_4, %c0_5, %c0_6] : memref<2x4x10xf32, #tpu.memory_space<vmem>>, vector<2x4x10xf32>
    %7 = arith.addf %6, %5 : vector<2x4x10xf32>
    %c0_7 = arith.constant 0 : index
    %c0_8 = arith.constant 0 : index
    %c0_9 = arith.constant 0 : index
    %8 = vector.load %arg4[%c0_7, %c0_8, %c0_9] : memref<2x4x10xf32, #tpu.memory_space<vmem>>, vector<2x4x10xf32>
    tpu.vector_store %arg4[%c0_7, %c0_8, %c0_9], %7 {strides = array<i32>} : memref<2x4x10xf32, #tpu.memory_space<vmem>>, vector<2x4x10xf32>,
    return
  }
  func.func @transform_0(%arg0: i32) -> (i32, i32, i32) {
    %c0_i32 = arith.constant 0 : i32
    %c0_i32_0 = arith.constant 0 : i32
    %c0_i32_1 = arith.constant 0 : i32
    return %arg0, %c0_i32, %c0_i32_0 : i32, i32, i32
  }
  func.func @transform_1(%arg0: i32) -> (i32, i32) {
    %c0_i32 = arith.constant 0 : i32
    %c0_i32_0 = arith.constant 0 : i32
    %c0_i32_1 = arith.constant 0 : i32
    return %c0_i32, %c0_i32_0 : i32, i32
  }
  func.func @transform_2(%arg0: i32) -> (i32, i32, i32) {
    %c0_i32 = arith.constant 0 : i32
    %c0_i32_0 = arith.constant 0 : i32
    %c0_i32_1 = arith.constant 0 : i32
    return %arg0, %c0_i32, %c0_i32_0 : i32, i32, i32
  }
  func.func @transform_3(%arg0: i32) -> (i32, i32, i32) {
    %c0_i32 = arith.constant 0 : i32
    %c0_i32_0 = arith.constant 0 : i32
    %c0_i32_1 = arith.constant 0 : i32
    return %arg0, %c0_i32, %c0_i32_0 : i32, i32, i32
  }
}

</mosaic_0001>

<llo_original>
// kernel: tpu_custom_call.1
$region0: #{tpu_custom_call.1}
  #allocation0 [shape = 'u32[]', space=smem, size = 0x4, offset = 0x4, fixed_abs, tag = 'smem constant byte address 0x4 - core index']
  #allocation1 [shape = 'u32[144,128]{1,0:T(1,128)}', space=vmem, size = 0x12000, scoped, tag = 'internal scratch']
  %s0 = inlined_call_operand.vmem [shape: f32[2,16,10], index: 0, kind: input, shape index: {}]
  %s1 = inlined_call_operand.vmem [shape: f32[4,16], index: 1, kind: input, shape index: {}]
  %s2 = inlined_call_operand.vmem [shape: f32[2,4,10], index: 2, kind: input, shape index: {}]
  %s3 = inlined_call_operand.hbm [shape: f32[2,4,10], index: 3, kind: output, shape index: {}]
  %s4 = sld [smem:[#allocation0]]
  $region22: #{tpu_custom_call.1} parent=0
    _
  %s6 = ssub.s32 1, %s4
  %s7 = scalar_select 0, %s6, %s4
  $region1: #{tpu_custom_call.1} parent=0
    #allocation2 [shape = 'u8[4096]{0}', space=vmem, size = 0x1000, scoped, tag = 'output window, operand 0, single buffered']
    #allocation3 [shape = 's32[1]{0}', space=sflag, size = 0x4, scoped, tag = 'scoped memory for tpu_custom_call.1']
    %8 = vsyncpa [#allocation3], 0
    // Predicated region
    $region2: #{tpu_custom_call.1} parent=1 // pred_check
      _
    $region3: #{tpu_custom_call.1} parent=1 // pred_check_branch
      %10 = sbr.rel (0) target = $region5
    $region4: #{tpu_custom_call.1} parent=1 // pred_region
      _
    $region5: #{tpu_custom_call.1} parent=1 // pred_fallthru
      _
    // Predicated region
    $region6: #{tpu_custom_call.1} parent=1 // pred_check
      _
    $region7: #{tpu_custom_call.1} parent=1 // pred_check_branch
      %12 = sbr.rel (0) target = $region9
    $region8: #{tpu_custom_call.1} parent=1 // pred_region
      _
    $region9: #{tpu_custom_call.1} parent=1 // pred_fallthru
      _
    // Predicated region
    $region10: #{tpu_custom_call.1} parent=1 // pred_check
      _
    $region11: #{tpu_custom_call.1} parent=1 // pred_check_branch
      %14 = sbr.rel (0) target = $region13
    $region12: #{tpu_custom_call.1} parent=1 // pred_region
      _
    $region13: #{tpu_custom_call.1} parent=1 // pred_fallthru
      _
    %v15 = vld [vmem:[%s1] sm:$0xf]
    %v16 = vld [vmem:[%s0] sm:$0xff]
    %v17 = vld [vmem:[%s0 + $0x8] sm:$0xff]
    %v18 = vld [vmem:[%s0 + $0x10] sm:$0xff]
    %v19 = vld [vmem:[%s0 + $0x18] sm:$0xff]
    %vm20 = vcmask 130048
    %v22 = vsel %vm20, %v15, 0
    %24 = vmatprep.subr.mxu0 0.0
    %25 = vmatpush1.msra.mxu0 0.0
    %26 = vmatprep.subr.mxu0 0.0
    %27 = vmatpush1.msra.mxu0 0.0
    %28 = vmatprep.subr.mxu0 0.0
    %29 = vmatpush1.msra.mxu0 0.0
    %30 = vmatprep.subr.mxu0 0.0
    %31 = vmatpush1.msra.mxu0 0.0
    %32 = vmatprep.subr.mxu0 0.0
    %33 = vmatpush1.msra.mxu0 0.0
    %34 = vmatprep.subr.mxu0 0.0
    %35 = vmatpush1.msra.mxu0 0.0
    %36 = vmatprep.subr.mxu0 0.0
    %37 = vmatpush1.msra.mxu0 0.0
    %38 = vmatprep.subr.mxu0 0.0
    %39 = vmatpush1.msra.mxu0 0.0
    %40 = vmatprep.subr.mxu0 0.0
    %41 = vmatpush1.msra.mxu0 0.0
    %42 = vmatprep.subr.mxu0 0.0
    %43 = vmatpush1.msra.mxu0 0.0
    %44 = vmatprep.subr.mxu0 0.0
    %45 = vmatpush1.msra.mxu0 0.0
    %46 = vmatprep.subr.mxu0 0.0
    %47 = vmatpush1.msra.mxu0 0.0
    %48 = vmatprep.subr.mxu0 0.0
    %49 = vmatpush1.msra.mxu0 0.0
    %50 = vmatprep.subr.mxu0 0.0
    %51 = vmatpush1.msra.mxu0 0.0
    %52 = vmatprep.subr.mxu0 0.0
    %53 = vmatpush1.msra.mxu0 %v17
    %54 = vmatprep.subr.mxu0 0.0
    %55 = vmatpush1.msra.mxu0 %v16
    %56 = vmatprep.subr.mxu0 0.0
    %57 = vmatpush2.msra.mxu0 0.0
    %58 = vmatprep.subr.mxu0 0.0
    %59 = vmatpush2.msra.mxu0 0.0
    %60 = vmatprep.subr.mxu0 0.0
    %61 = vmatpush2.msra.mxu0 0.0
    %62 = vmatprep.subr.mxu0 0.0
    %63 = vmatpush2.msra.mxu0 0.0
    %64 = vmatprep.subr.mxu0 0.0
    %65 = vmatpush2.msra.mxu0 0.0
    %66 = vmatprep.subr.mxu0 0.0
    %67 = vmatpush2.msra.mxu0 0.0
    %68 = vmatprep.subr.mxu0 0.0
    %69 = vmatpush2.msra.mxu0 0.0
    %70 = vmatprep.subr.mxu0 0.0
    %71 = vmatpush2.msra.mxu0 0.0
    %72 = vmatprep.subr.mxu0 0.0
    %73 = vmatpush2.msra.mxu0 0.0
    %74 = vmatprep.subr.mxu0 0.0
    %75 = vmatpush2.msra.mxu0 0.0
    %76 = vmatprep.subr.mxu0 0.0
    %77 = vmatpush2.msra.mxu0 0.0
    %78 = vmatprep.subr.mxu0 0.0
    %79 = vmatpush2.msra.mxu0 0.0
    %80 = vmatprep.subr.mxu0 0.0
    %81 = vmatpush2.msra.mxu0 0.0
    %82 = vmatprep.subr.mxu0 0.0
    %83 = vmatpush2.msra.mxu0 0.0
    %84 = vmatprep.subr.mxu0 0.0
    %85 = vmatpush2.msra.mxu0 0.0
    %86 = vmatprep.subr.mxu0 0.0
    %87 = vmatpush2.msra.mxu0 0.0
    %88 = vmatprep.mubr.f32.mxu0 0.0
    %89 = vmatmul.mubr.f32.gmra.mxu0 %v22
    %v90 = vpop.f32.mrf.mxu0
    %v91 = vadd.f32 0.0, %v90
    %v92 = vpop.f32.mrf.mxu0
    %93 = vdwg.mxu0
    %94 = vmatprep.subr.mxu0 0.0
    %95 = vmatpush1.msra.mxu0 0.0
    %96 = vmatprep.subr.mxu0 0.0
    %97 = vmatpush1.msra.mxu0 0.0
    %98 = vmatprep.subr.mxu0 0.0
    %99 = vmatpush1.msra.mxu0 0.0
    %100 = vmatprep.subr.mxu0 0.0
    %101 = vmatpush1.msra.mxu0 0.0
    %102 = vmatprep.subr.mxu0 0.0
    %103 = vmatpush1.msra.mxu0 0.0
    %104 = vmatprep.subr.mxu0 0.0
    %105 = vmatpush1.msra.mxu0 0.0
    %106 = vmatprep.subr.mxu0 0.0
    %107 = vmatpush1.msra.mxu0 0.0
    %108 = vmatprep.subr.mxu0 0.0
    %109 = vmatpush1.msra.mxu0 0.0
    %110 = vmatprep.subr.mxu0 0.0
    %111 = vmatpush1.msra.mxu0 0.0
    %112 = vmatprep.subr.mxu0 0.0
    %113 = vmatpush1.msra.mxu0 0.0
    %114 = vmatprep.subr.mxu0 0.0
    %115 = vmatpush1.msra.mxu0 0.0
    %116 = vmatprep.subr.mxu0 0.0
    %117 = vmatpush1.msra.mxu0 0.0
    %118 = vmatprep.subr.mxu0 0.0
    %119 = vmatpush1.msra.mxu0 0.0
    %120 = vmatprep.subr.mxu0 0.0
    %121 = vmatpush1.msra.mxu0 0.0
    %122 = vmatprep.subr.mxu0 0.0
    %123 = vmatpush1.msra.mxu0 %v19
    %124 = vmatprep.subr.mxu0 0.0
    %125 = vmatpush1.msra.mxu0 %v18
    %126 = vmatprep.subr.mxu0 0.0
    %127 = vmatpush2.msra.mxu0 0.0
    %128 = vmatprep.subr.mxu0 0.0
    %129 = vmatpush2.msra.mxu0 0.0
    %130 = vmatprep.subr.mxu0 0.0
    %131 = vmatpush2.msra.mxu0 0.0
    %132 = vmatprep.subr.mxu0 0.0
    %133 = vmatpush2.msra.mxu0 0.0
    %134 = vmatprep.subr.mxu0 0.0
    %135 = vmatpush2.msra.mxu0 0.0
    %136 = vmatprep.subr.mxu0 0.0
    %137 = vmatpush2.msra.mxu0 0.0
    %138 = vmatprep.subr.mxu0 0.0
    %139 = vmatpush2.msra.mxu0 0.0
    %140 = vmatprep.subr.mxu0 0.0
    %141 = vmatpush2.msra.mxu0 0.0
    %142 = vmatprep.subr.mxu0 0.0
    %143 = vmatpush2.msra.mxu0 0.0
    %144 = vmatprep.subr.mxu0 0.0
    %145 = vmatpush2.msra.mxu0 0.0
    %146 = vmatprep.subr.mxu0 0.0
    %147 = vmatpush2.msra.mxu0 0.0
    %148 = vmatprep.subr.mxu0 0.0
    %149 = vmatpush2.msra.mxu0 0.0
    %150 = vmatprep.subr.mxu0 0.0
    %151 = vmatpush2.msra.mxu0 0.0
    %152 = vmatprep.subr.mxu0 0.0
    %153 = vmatpush2.msra.mxu0 0.0
    %154 = vmatprep.subr.mxu0 0.0
    %155 = vmatpush2.msra.mxu0 0.0
    %156 = vmatprep.subr.mxu0 0.0
    %157 = vmatpush2.msra.mxu0 0.0
    %158 = vmatprep.mubr.f32.mxu0 0.0
    %159 = vmatmul.mubr.f32.gmra.mxu0 %v22
    %v160 = vpop.f32.mrf.mxu0
    %v161 = vadd.f32 0.0, %v160
    %v162 = vpop.f32.mrf.mxu0
    %163 = vdwg.mxu0
    %v164 = vld [vmem:[%s2] sm:$0xf]
    %v165 = vld [vmem:[%s2 + $0x4] sm:$0xf]
    %v166 = vadd.f32 %v164, %v91
    %v167 = vadd.f32 %v165, %v161
    %vm168 = vcmask 76800
    %169 = vst.msk [vmem:[#allocation2] sm:$0xf] %vm168, %v166
    %170 = vst.msk [vmem:[#allocation2 + $0x4] sm:$0xf] %vm168, %v167
    // Predicated region
    $region14: #{tpu_custom_call.1} parent=1 // pred_check
      _
    $region15: #{tpu_custom_call.1} parent=1 // pred_check_branch
      %172 = sbr.rel (0) target = $region17
    $region16: #{tpu_custom_call.1} parent=1 // pred_region
      %s174 = ssub.s32 128, 128
      %175 = vsyncadd [#allocation3], %s174
      %s176 = sshll.u32 [#allocation2], 4
      %s177 = int_to_ptr.vmem [resolvable:$true] %s176
      %182 = dma.vmem_to_hbm [thread:$0]  %s177, 128, %s3, [#allocation3], 64, 64, 4
    $region17: #{tpu_custom_call.1} parent=1 // pred_fallthru
      _
    // Predicated region
    $region18: #{tpu_custom_call.1} parent=1 // pred_check
      _
    $region19: #{tpu_custom_call.1} parent=1 // pred_check_branch
      %184 = sbr.rel (0) target = $region21
    $region20: #{tpu_custom_call.1} parent=1 // pred_region
      %185 = dma.done [#allocation3], 128
    $region21: #{tpu_custom_call.1} parent=1 // pred_fallthru
      _
    %186 = vsyncpa [#allocation3], 1

</llo_original>
